<compile_context>
chip_gen: v6e
topology: v6e:2x2x1
jax: 0.10.0
libtpu: 0.0.40
codegen_flags: <defaults>
</compile_context>

<pallas_src>
import jax
import jax.numpy as jnp
from jax.experimental import pallas as pl
from jax.experimental.pallas import tpu as pltpu


_LANES = 512  # lane-dense width: large multiple of 128 -> unmasked vst path


def _identity_copy_kernel(x_ref, o_ref):
    # Straight tile copy through VMEM (one HBM read + one HBM write per elem).
    o_ref[...] = x_ref[...]


def _resolve_view_shape(total_elems, shape):
    """Replicate torch.Tensor.view shape resolution (a single -1 allowed)."""
    shape = list(shape)
    neg = [i for i, s in enumerate(shape) if s == -1]
    if len(neg) > 1:
        raise ValueError("only one dimension can be inferred (-1)")
    if neg:
        known = 1
        for i, s in enumerate(shape):
            if i != neg[0]:
                known *= s
        if known == 0 or total_elems % known != 0:
            raise ValueError(f"shape {shape} is invalid for input of size {total_elems}")
        shape[neg[0]] = total_elems // known
    prod = 1
    for s in shape:
        prod *= s
    if prod != total_elems:
        raise ValueError(f"shape {shape} is invalid for input of size {total_elems}")
    return tuple(shape)


def _default_row_tile(dtype):
    """Row tile so one (row_tile, _LANES) block is ~2 MiB (VMEM-safe everywhere)."""
    itemsize = jnp.dtype(dtype).itemsize
    sublane = max(8, 32 // itemsize)          # 8 (32-bit) / 16 (16-bit) / 32 (8-bit)
    target_bytes = 2 * 1024 * 1024            # ~2 MiB; x2 (in+out) x2 (dbl buf) = ~8 MiB
    rt = target_bytes // (_LANES * itemsize)
    return max(sublane, (rt // sublane) * sublane)


def _pallas_materialize_copy(x, row_tile=None):
    """Explicit copy of x's contiguous buffer through a Pallas kernel.

    Returns a flat 1-D array with x.size elements (same values, same order).
    """
    total = x.size
    dtype = x.dtype
    itemsize = jnp.dtype(dtype).itemsize
    if row_tile is None:
        row_tile = _default_row_tile(dtype)

    lanes = _LANES
    rows = pl.cdiv(total, lanes)
    padded = rows * lanes

    flat = x.reshape(-1)
    if padded != total:
        # Tiny tail pad (< lanes elements) so the buffer factors as (rows, lanes).
        flat = jnp.pad(flat, (0, padded - total))
    x2d = flat.reshape(rows, lanes)

    if rows <= row_tile:
        # Single block; a full-extent rows dim is always a legal block shape.
        block_rows = rows
        grid = (1,)
    else:
        # Big tiles; last block is masked if rows % row_tile != 0.
        block_rows = row_tile
        grid = (pl.cdiv(rows, row_tile),)

    cost = pl.CostEstimate(
        flops=0,
        transcendentals=0,
        bytes_accessed=2 * padded * itemsize,  # one HBM read + one HBM write
    )

    y2d = pl.pallas_call(
        _identity_copy_kernel,
        out_shape=jax.ShapeDtypeStruct((rows, lanes), dtype),
        grid=grid,
        in_specs=[pl.BlockSpec((block_rows, lanes), lambda i: (i, 0))],
        out_specs=pl.BlockSpec((block_rows, lanes), lambda i: (i, 0)),
        compiler_params=pltpu.CompilerParams(
            dimension_semantics=("parallel",),  # shards across the 2 TCs on v7x
        ),
        cost_estimate=cost,
    )(x2d)

    flat_out = y2d.reshape(-1)
    if padded != total:
        flat_out = flat_out[:total]
    return flat_out


def pallas_view(x, shape, materialize=False, row_tile=None):
    """Equivalent of View(shape)(x).

    Default (materialize=False): metadata-only reshape -- zero HBM traffic,
    matching torch .view semantics on a contiguous tensor.
    materialize=True: route the data through the Pallas identity-copy kernel
    (explicit HBM read + write), then apply the metadata reshape.
    """
    total = x.size
    out_shape = _resolve_view_shape(total, shape)
    if not materialize:
        return x.reshape(out_shape)
    flat = _pallas_materialize_copy(x, row_tile=row_tile)
    return flat.reshape(out_shape)


class View:
    """JAX/Pallas counterpart of the PyTorch View module."""

    def __init__(self, shape, materialize=False):
        self.shape = tuple(shape)
        self.materialize = materialize

    def __call__(self, x):
        return pallas_view(x, self.shape, materialize=self.materialize)


if __name__ == "__main__":
    key = jax.random.PRNGKey(0)
    k1, k2 = jax.random.split(key)

    # --- Case 1: the module as used in the 3D-cGAN discriminator flatten ---
    # (batch=2, channels=4, H=16, W=16) -> View((-1, 4*16*16)) -> (2, 1024).
    # Fast path: metadata-only, no kernel launch.
    x = jax.random.normal(k1, (2, 4, 16, 16), dtype=jnp.float32)
    view = View((-1, 4 * 16 * 16))
    y = jax.block_until_ready(view(x))
    ref = x.reshape(-1, 4 * 16 * 16)
    assert y.shape == (2, 1024), y.shape
    assert y.dtype == x.dtype
    assert bool(jnp.array_equal(y, ref))

    # --- Case 2: same input through the materializing Pallas copy kernel ---
    # (single full-extent block path: rows=4, lanes=512)
    y_mat = jax.block_until_ready(pallas_view(x, (-1, 1024), materialize=True))
    assert y_mat.shape == (2, 1024)
    assert y_mat.dtype == x.dtype
    assert bool(jnp.array_equal(y_mat, ref))

    # --- Case 3: oddly-sized input exercising pad + tiled grid + masked last tile ---
    # 9000 elements -> rows=18 (padded), row_tile=8 -> grid of 3 with a partial block.
    x3 = jax.random.normal(k2, (3, 3000), dtype=jnp.float32)
    y3 = jax.block_until_ready(pallas_view(x3, (9, -1), materialize=True, row_tile=8))
    ref3 = x3.reshape(9, 1000)
    assert y3.shape == (9, 1000), y3.shape
    assert bool(jnp.array_equal(y3, ref3))

    print("KERNEL_OK")
</pallas_src>

<mosaic_0001>
module attributes {stable_mosaic.version = 11 : i64} {
  func.func @_identity_copy_kernel(%arg0: i32, %arg1: memref<4x512xf32, #tpu.memory_space<vmem>>, %arg2: memref<4x512xf32, #tpu.memory_space<vmem>>) attributes {dimension_semantics = [#tpu.dimension_semantics<parallel>], iteration_bounds = array<i64: 1>, scalar_prefetch = 0 : i64, scratch_operands = 0 : i64, tpu.core_type = #tpu.core_type<tc>, window_params = [{transform_indices = @transform_0, window_bounds = array<i64: 4, 512>}, {transform_indices = @transform_1, window_bounds = array<i64: 4, 512>}]} {
    %c0 = arith.constant 0 : index
    %c0_0 = arith.constant 0 : index
    %0 = vector.load %arg1[%c0, %c0_0] : memref<4x512xf32, #tpu.memory_space<vmem>>, vector<4x512xf32>
    %c0_1 = arith.constant 0 : index
    %c0_2 = arith.constant 0 : index
    %1 = vector.load %arg2[%c0_1, %c0_2] : memref<4x512xf32, #tpu.memory_space<vmem>>, vector<4x512xf32>
    tpu.vector_store %arg2[%c0_1, %c0_2], %0 {strides = array<i32>} : memref<4x512xf32, #tpu.memory_space<vmem>>, vector<4x512xf32>,
    return
  }
  func.func @transform_0(%arg0: i32) -> (i32, i32) {
    %c0_i32 = arith.constant 0 : i32
    %c0_i32_0 = arith.constant 0 : i32
    return %arg0, %c0_i32 : i32, i32
  }
  func.func @transform_1(%arg0: i32) -> (i32, i32) {
    %c0_i32 = arith.constant 0 : i32
    %c0_i32_0 = arith.constant 0 : i32
    return %arg0, %c0_i32 : i32, i32
  }
}

</mosaic_0001>

<llo_original>
// kernel: tpu_custom_call.1
$region0: #{tpu_custom_call.1}
  #allocation0 [shape = 'u32[]', space=smem, size = 0x4, offset = 0x4, fixed_abs, tag = 'smem constant byte address 0x4 - core index']
  #allocation1 [shape = 'u32[144,128]{1,0:T(1,128)}', space=vmem, size = 0x12000, scoped, tag = 'internal scratch']
  %s0 = inlined_call_operand.hbm [shape: f32[4,512], index: 0, kind: input, shape index: {}]
  %s1 = inlined_call_operand.hbm [shape: f32[4,512], index: 1, kind: output, shape index: {}]
  %s2 = sld [smem:[#allocation0]]
  $region18: #{tpu_custom_call.1} parent=0
    _
  %s4 = ssub.s32 1, %s2
  %s5 = scalar_select 0, %s4, %s2
  $region1: #{tpu_custom_call.1} parent=0
    #allocation2 [shape = 'u8[8192]{0}', space=vmem, size = 0x2000, scoped, tag = 'input window, operand 0, single buffered']
    #allocation3 [shape = 's32[1]{0}', space=sflag, size = 0x4, scoped, tag = 'scoped memory for tpu_custom_call.1']
    #allocation4 [shape = 's32[1]{0}', space=sflag, size = 0x4, scoped, tag = 'scoped memory for tpu_custom_call.1']
    #allocation5 [shape = 'u8[8192]{0}', space=vmem, size = 0x2000, scoped, tag = 'output window, operand 0, single buffered']
    %6 = vsyncpa [#allocation3], 0
    %7 = vsyncpa [#allocation4], 0
    // Predicated region
    $region2: #{tpu_custom_call.1} parent=1 // pred_check
      _
    $region3: #{tpu_custom_call.1} parent=1 // pred_check_branch
      %9 = sbr.rel (0) target = $region5
    $region4: #{tpu_custom_call.1} parent=1 // pred_region
      %s11 = ssub.s32 256, 256
      %12 = vsyncadd [#allocation3], %s11
      %s14 = sshll.u32 [#allocation2], 4
      %s15 = int_to_ptr.vmem [resolvable:$true] %s14
      %17 = dma.hbm_to_vmem [thread:$0]  %s0, 256, %s15, [#allocation3]
    $region5: #{tpu_custom_call.1} parent=1 // pred_fallthru
      _
    // Predicated region
    $region6: #{tpu_custom_call.1} parent=1 // pred_check
      _
    $region7: #{tpu_custom_call.1} parent=1 // pred_check_branch
      %19 = sbr.rel (0) target = $region9
    $region8: #{tpu_custom_call.1} parent=1 // pred_region
      %20 = dma.done [#allocation3], 256
    $region9: #{tpu_custom_call.1} parent=1 // pred_fallthru
      _
    %v21 = vld [vmem:[#allocation2] sm:$0xff]
    %v22 = vld [vmem:[#allocation2 + $0x8] sm:$0xff]
    %23 = vst [vmem:[#allocation5] sm:$0xff] %v21
    %24 = vst [vmem:[#allocation5 + $0x8] sm:$0xff] %v22
    // Predicated region
    $region10: #{tpu_custom_call.1} parent=1 // pred_check
      _
    $region11: #{tpu_custom_call.1} parent=1 // pred_check_branch
      %26 = sbr.rel (0) target = $region13
    $region12: #{tpu_custom_call.1} parent=1 // pred_region
      %s28 = ssub.s32 256, 256
      %29 = vsyncadd [#allocation4], %s28
      %s31 = sshll.u32 [#allocation5], 4
      %s32 = int_to_ptr.vmem [resolvable:$true] %s31
      %34 = dma.vmem_to_hbm [thread:$0]  %s32, 256, %s1, [#allocation4]
    $region13: #{tpu_custom_call.1} parent=1 // pred_fallthru
      _
    // Predicated region
    $region14: #{tpu_custom_call.1} parent=1 // pred_check
      _
    $region15: #{tpu_custom_call.1} parent=1 // pred_check_branch
      %36 = sbr.rel (0) target = $region17
    $region16: #{tpu_custom_call.1} parent=1 // pred_region
      %37 = dma.done [#allocation4], 256
    $region17: #{tpu_custom_call.1} parent=1 // pred_fallthru
      _
    %38 = vsyncpa [#allocation3], 1
    %39 = vsyncpa [#allocation4], 1

</llo_original>
